<compile_context>
chip_gen: v7x
topology: tpu7x:2x2x1
jax: 0.10.0
libtpu: 0.0.40
codegen_flags: <defaults>
</compile_context>

<pallas_src>
import jax
import jax.numpy as jnp
import numpy as np
from jax import lax
from jax.experimental import pallas as pl
from jax.experimental.pallas import tpu as pltpu


def lstm_predictor_kernel(x_ref, wih_ref, whh_ref, b_ref, wfc_ref, bfc_ref,
                          out_ref):
    # x_ref:   (T*B, I)  time-major, flattened
    # wih_ref: (I, 4H)   W_ih^T
    # whh_ref: (H, 4H)   W_hh^T
    # b_ref:   (1, 4H)   b_ih + b_hh
    # wfc_ref: (1, H)    fc weight row
    # bfc_ref: (1,)      fc bias scalar (SMEM)
    # out_ref: (B, 1)
    B = out_ref.shape[0]
    TB = x_ref.shape[0]
    T = TB // B
    H = whh_ref.shape[0]
    H4 = 4 * H

    # 1) Hoisted input projection for the whole sequence: one MXU call, bias
    #    folded in.  xg: (T*B, 4H).
    xg = (jnp.dot(x_ref[...], wih_ref[...], preferred_element_type=jnp.float32)
          + b_ref[...])

    # 2) Lane mask selecting the 'g' (cell candidate) quarter of the 4H gate
    #    lanes: that quarter gets tanh, the rest sigmoid.
    lane = jax.lax.broadcasted_iota(jnp.int32, (B, H4), dimension=1)
    g_mask = (lane >= 2 * H) & (lane < 3 * H)

    whh = whh_ref[...]
    h = jnp.zeros((B, H), jnp.float32)
    c = jnp.zeros((B, H), jnp.float32)

    # 3) Fully static (unrolled) time recurrence.  Only the h @ W_hh^T matmul
    #    sits on the serial dependency chain per step.
    for t in range(T):
        gates = xg[t * B:(t + 1) * B, :] + jnp.dot(
            h, whh, preferred_element_type=jnp.float32)
        # Full-vreg activations: 2 EUP passes over all 4H lanes + a select,
        # instead of 4 quarter-width transcendental launches.
        act = jnp.where(g_mask, jnp.tanh(gates), jax.nn.sigmoid(gates))
        i_g = act[:, 0 * H:1 * H]
        f_g = act[:, 1 * H:2 * H]
        g_g = act[:, 2 * H:3 * H]
        o_g = act[:, 3 * H:4 * H]
        c = f_g * c + i_g * g_g
        h = o_g * jnp.tanh(c)

    # 4) fc head on the last hidden state: VPU multiply + lane reduce
    #    (cheaper than an N=1 MXU push), scalar bias from SMEM.
    out_ref[...] = (jnp.sum(h * wfc_ref[...], axis=-1, keepdims=True)
                    + bfc_ref[0]).astype(out_ref.dtype)


def bandwidth_predictor_forward(x, w_ih, w_hh, b_ih, b_hh, w_fc, b_fc):
    """x: (B, T, I) float32. Returns (B, 1) float32, matching the PyTorch module."""
    B, T, I = x.shape
    H4 = w_ih.shape[0]
    H = H4 // 4

    # Layout prep (tiny XLA ops, done once outside the kernel):
    #   time-major flattened x so the hoisted projection is a single matmul and
    #   each step's slice is a contiguous block of rows.
    x2d = jnp.transpose(jnp.asarray(x, jnp.float32), (1, 0, 2)).reshape(T * B, I)
    wih_t = jnp.asarray(w_ih, jnp.float32).T                   # (I, 4H)
    whh_t = jnp.asarray(w_hh, jnp.float32).T                   # (H, 4H)
    b = (jnp.asarray(b_ih, jnp.float32)
         + jnp.asarray(b_hh, jnp.float32)).reshape(1, H4)      # (1, 4H)
    wfc_row = jnp.asarray(w_fc, jnp.float32).reshape(1, H)     # (1, H)
    bfc = jnp.asarray(b_fc, jnp.float32).reshape(1)            # (1,)

    return pl.pallas_call(
        lstm_predictor_kernel,
        out_shape=jax.ShapeDtypeStruct((B, 1), jnp.float32),
        in_specs=[
            pl.BlockSpec(memory_space=pltpu.MemorySpace.VMEM),   # x (T*B, I)
            pl.BlockSpec(memory_space=pltpu.MemorySpace.VMEM),   # W_ih^T
            pl.BlockSpec(memory_space=pltpu.MemorySpace.VMEM),   # W_hh^T
            pl.BlockSpec(memory_space=pltpu.MemorySpace.VMEM),   # bias (1, 4H)
            pl.BlockSpec(memory_space=pltpu.MemorySpace.VMEM),   # W_fc row
            pl.BlockSpec(memory_space=pltpu.MemorySpace.SMEM),   # b_fc scalar
        ],
        out_specs=pl.BlockSpec(memory_space=pltpu.MemorySpace.VMEM),
    )(x2d, wih_t, whh_t, b, wfc_row, bfc)


def reference_forward(x, w_ih, w_hh, b_ih, b_hh, w_fc, b_fc):
    """Pure-JAX reference (mirrors torch.nn.LSTM + Linear)."""
    B, T, I = x.shape
    H = w_hh.shape[1]

    def step(carry, x_t):
        h, c = carry
        gates = x_t @ w_ih.T + b_ih + h @ w_hh.T + b_hh
        i_g = jax.nn.sigmoid(gates[:, 0 * H:1 * H])
        f_g = jax.nn.sigmoid(gates[:, 1 * H:2 * H])
        g_g = jnp.tanh(gates[:, 2 * H:3 * H])
        o_g = jax.nn.sigmoid(gates[:, 3 * H:4 * H])
        c = f_g * c + i_g * g_g
        h = o_g * jnp.tanh(c)
        return (h, c), h

    h0 = jnp.zeros((B, H), jnp.float32)
    c0 = jnp.zeros((B, H), jnp.float32)
    (h_last, _), _ = lax.scan(step, (h0, c0), jnp.transpose(x, (1, 0, 2)))
    return h_last @ w_fc.T + b_fc


if __name__ == "__main__":
    # Module config (constructor args of BandwidthPredictor).
    INPUT_SIZE = 4
    HIDDEN_SIZE = 32
    # Example input shapes.
    B, T = 2, 8

    key = jax.random.PRNGKey(0)
    k = jax.random.split(key, 7)
    bound = 1.0 / np.sqrt(HIDDEN_SIZE)   # PyTorch LSTM/Linear uniform init range

    x = jax.random.normal(k[0], (B, T, INPUT_SIZE), jnp.float32)
    w_ih = jax.random.uniform(k[1], (4 * HIDDEN_SIZE, INPUT_SIZE), jnp.float32,
                              -bound, bound)
    w_hh = jax.random.uniform(k[2], (4 * HIDDEN_SIZE, HIDDEN_SIZE), jnp.float32,
                              -bound, bound)
    b_ih = jax.random.uniform(k[3], (4 * HIDDEN_SIZE,), jnp.float32, -bound, bound)
    b_hh = jax.random.uniform(k[4], (4 * HIDDEN_SIZE,), jnp.float32, -bound, bound)
    w_fc = jax.random.uniform(k[5], (1, HIDDEN_SIZE), jnp.float32, -bound, bound)
    b_fc = jax.random.uniform(k[6], (1,), jnp.float32, -bound, bound)

    pred = bandwidth_predictor_forward(x, w_ih, w_hh, b_ih, b_hh, w_fc, b_fc)
    pred = jax.block_until_ready(pred)

    ref = reference_forward(x, w_ih, w_hh, b_ih, b_hh, w_fc, b_fc)
    np.testing.assert_allclose(np.asarray(pred), np.asarray(ref),
                               rtol=1e-5, atol=1e-5)
    assert pred.shape == (B, 1)

    print("KERNEL_OK")
</pallas_src>

<mosaic_0001>
module attributes {stable_mosaic.version = 11 : i64} {
  func.func @lstm_predictor_kernel(%arg0: memref<16x4xf32, #tpu.memory_space<vmem>>, %arg1: memref<4x128xf32, #tpu.memory_space<vmem>>, %arg2: memref<32x128xf32, #tpu.memory_space<vmem>>, %arg3: memref<1x128xf32, #tpu.memory_space<vmem>>, %arg4: memref<1x32xf32, #tpu.memory_space<vmem>>, %arg5: memref<1xf32, #tpu.memory_space<smem>>, %arg6: memref<2x1xf32, #tpu.memory_space<vmem>>) attributes {dimension_semantics = [], scalar_prefetch = 0 : i64, scratch_operands = 0 : i64, tpu.core_type = #tpu.core_type<tc>} {
    %c0 = arith.constant 0 : index
    %c0_0 = arith.constant 0 : index
    %0 = vector.load %arg0[%c0, %c0_0] : memref<16x4xf32, #tpu.memory_space<vmem>>, vector<16x4xf32>
    %c0_1 = arith.constant 0 : index
    %c0_2 = arith.constant 0 : index
    %1 = vector.load %arg1[%c0_1, %c0_2] : memref<4x128xf32, #tpu.memory_space<vmem>>, vector<4x128xf32>
    %cst = arith.constant dense<0.000000e+00> : vector<16x128xf32>
    %2 = tpu.matmul %0, %1, %cst {dimension_numbers = #tpu.dot_dimension_numbers<[1], [0], [0], [1], [0, 0, 1, 1], [], []>} : vector<16x4xf32>, vector<4x128xf32>, vector<16x128xf32> -> vector<16x128xf32>
    %c0_3 = arith.constant 0 : index
    %c0_4 = arith.constant 0 : index
    %3 = vector.load %arg3[%c0_3, %c0_4] : memref<1x128xf32, #tpu.memory_space<vmem>>, vector<1x128xf32>
    %4 = vector.broadcast %3 : vector<1x128xf32> to vector<16x128xf32>
    %5 = arith.addf %2, %4 : vector<16x128xf32>
    %6 = tpu.iota {dimensions = array<i32: 1>} : vector<2x128xi32>
    %c64_i32 = arith.constant 64 : i32
    %7 = vector.broadcast %c64_i32 : i32 to vector<2x128xi32>
    %8 = arith.cmpi sge, %6, %7 : vector<2x128xi32>
    %c96_i32 = arith.constant 96 : i32
    %9 = vector.broadcast %c96_i32 : i32 to vector<2x128xi32>
    %10 = arith.cmpi slt, %6, %9 : vector<2x128xi32>
    %11 = arith.andi %8, %10 : vector<2x128xi1>
    %c0_5 = arith.constant 0 : index
    %c0_6 = arith.constant 0 : index
    %12 = vector.load %arg2[%c0_5, %c0_6] : memref<32x128xf32, #tpu.memory_space<vmem>>, vector<32x128xf32>
    %cst_7 = arith.constant 0.000000e+00 : f32
    %13 = vector.broadcast %cst_7 : f32 to vector<2x32xf32>
    %cst_8 = arith.constant 0.000000e+00 : f32
    %14 = vector.broadcast %cst_8 : f32 to vector<2x32xf32>
    %15 = vector.extract_strided_slice %5 {offsets = [0, 0], sizes = [2, 128], strides = [1, 1]} : vector<16x128xf32> to vector<2x128xf32>
    %cst_9 = arith.constant dense<0.000000e+00> : vector<2x128xf32>
    %16 = tpu.matmul %13, %12, %cst_9 {dimension_numbers = #tpu.dot_dimension_numbers<[1], [0], [0], [1], [0, 0, 1, 1], [], []>} : vector<2x32xf32>, vector<32x128xf32>, vector<2x128xf32> -> vector<2x128xf32>
    %17 = arith.addf %15, %16 : vector<2x128xf32>
    %18 = math.tanh %17 : vector<2x128xf32>
    %19 = arith.negf %17 : vector<2x128xf32>
    %20 = math.exp %19 : vector<2x128xf32>
    %cst_10 = arith.constant 1.000000e+00 : f32
    %21 = vector.broadcast %cst_10 : f32 to vector<2x128xf32>
    %22 = arith.addf %21, %20 : vector<2x128xf32>
    %23 = arith.divf %21, %22 : vector<2x128xf32>
    %24 = arith.select %11, %18, %23 : vector<2x128xi1>, vector<2x128xf32>
    %25 = vector.extract_strided_slice %24 {offsets = [0, 0], sizes = [2, 32], strides = [1, 1]} : vector<2x128xf32> to vector<2x32xf32>
    %26 = vector.extract_strided_slice %24 {offsets = [0, 32], sizes = [2, 32], strides = [1, 1]} : vector<2x128xf32> to vector<2x32xf32>
    %27 = vector.extract_strided_slice %24 {offsets = [0, 64], sizes = [2, 32], strides = [1, 1]} : vector<2x128xf32> to vector<2x32xf32>
    %28 = vector.extract_strided_slice %24 {offsets = [0, 96], sizes = [2, 32], strides = [1, 1]} : vector<2x128xf32> to vector<2x32xf32>
    %29 = arith.mulf %26, %14 : vector<2x32xf32>
    %30 = arith.mulf %25, %27 : vector<2x32xf32>
    %31 = arith.addf %29, %30 : vector<2x32xf32>
    %32 = math.tanh %31 : vector<2x32xf32>
    %33 = arith.mulf %28, %32 : vector<2x32xf32>
    %34 = vector.extract_strided_slice %5 {offsets = [2, 0], sizes = [2, 128], strides = [1, 1]} : vector<16x128xf32> to vector<2x128xf32>
    %cst_11 = arith.constant dense<0.000000e+00> : vector<2x128xf32>
    %35 = tpu.matmul %33, %12, %cst_11 {dimension_numbers = #tpu.dot_dimension_numbers<[1], [0], [0], [1], [0, 0, 1, 1], [], []>} : vector<2x32xf32>, vector<32x128xf32>, vector<2x128xf32> -> vector<2x128xf32>
    %36 = arith.addf %34, %35 : vector<2x128xf32>
    %37 = math.tanh %36 : vector<2x128xf32>
    %38 = arith.negf %36 : vector<2x128xf32>
    %39 = math.exp %38 : vector<2x128xf32>
    %cst_12 = arith.constant 1.000000e+00 : f32
    %40 = vector.broadcast %cst_12 : f32 to vector<2x128xf32>
    %41 = arith.addf %40, %39 : vector<2x128xf32>
    %42 = arith.divf %40, %41 : vector<2x128xf32>
    %43 = arith.select %11, %37, %42 : vector<2x128xi1>, vector<2x128xf32>
    %44 = vector.extract_strided_slice %43 {offsets = [0, 0], sizes = [2, 32], strides = [1, 1]} : vector<2x128xf32> to vector<2x32xf32>
    %45 = vector.extract_strided_slice %43 {offsets = [0, 32], sizes = [2, 32], strides = [1, 1]} : vector<2x128xf32> to vector<2x32xf32>
    %46 = vector.extract_strided_slice %43 {offsets = [0, 64], sizes = [2, 32], strides = [1, 1]} : vector<2x128xf32> to vector<2x32xf32>
    %47 = vector.extract_strided_slice %43 {offsets = [0, 96], sizes = [2, 32], strides = [1, 1]} : vector<2x128xf32> to vector<2x32xf32>
    %48 = arith.mulf %45, %31 : vector<2x32xf32>
    %49 = arith.mulf %44, %46 : vector<2x32xf32>
    %50 = arith.addf %48, %49 : vector<2x32xf32>
    %51 = math.tanh %50 : vector<2x32xf32>
    %52 = arith.mulf %47, %51 : vector<2x32xf32>
    %53 = vector.extract_strided_slice %5 {offsets = [4, 0], sizes = [2, 128], strides = [1, 1]} : vector<16x128xf32> to vector<2x128xf32>
    %cst_13 = arith.constant dense<0.000000e+00> : vector<2x128xf32>
    %54 = tpu.matmul %52, %12, %cst_13 {dimension_numbers = #tpu.dot_dimension_numbers<[1], [0], [0], [1], [0, 0, 1, 1], [], []>} : vector<2x32xf32>, vector<32x128xf32>, vector<2x128xf32> -> vector<2x128xf32>
    %55 = arith.addf %53, %54 : vector<2x128xf32>
    %56 = math.tanh %55 : vector<2x128xf32>
    %57 = arith.negf %55 : vector<2x128xf32>
    %58 = math.exp %57 : vector<2x128xf32>
    %cst_14 = arith.constant 1.000000e+00 : f32
    %59 = vector.broadcast %cst_14 : f32 to vector<2x128xf32>
    %60 = arith.addf %59, %58 : vector<2x128xf32>
    %61 = arith.divf %59, %60 : vector<2x128xf32>
    %62 = arith.select %11, %56, %61 : vector<2x128xi1>, vector<2x128xf32>
    %63 = vector.extract_strided_slice %62 {offsets = [0, 0], sizes = [2, 32], strides = [1, 1]} : vector<2x128xf32> to vector<2x32xf32>
    %64 = vector.extract_strided_slice %62 {offsets = [0, 32], sizes = [2, 32], strides = [1, 1]} : vector<2x128xf32> to vector<2x32xf32>
    %65 = vector.extract_strided_slice %62 {offsets = [0, 64], sizes = [2, 32], strides = [1, 1]} : vector<2x128xf32> to vector<2x32xf32>
    %66 = vector.extract_strided_slice %62 {offsets = [0, 96], sizes = [2, 32], strides = [1, 1]} : vector<2x128xf32> to vector<2x32xf32>
    %67 = arith.mulf %64, %50 : vector<2x32xf32>
    %68 = arith.mulf %63, %65 : vector<2x32xf32>
    %69 = arith.addf %67, %68 : vector<2x32xf32>
    %70 = math.tanh %69 : vector<2x32xf32>
    %71 = arith.mulf %66, %70 : vector<2x32xf32>
    %72 = vector.extract_strided_slice %5 {offsets = [6, 0], sizes = [2, 128], strides = [1, 1]} : vector<16x128xf32> to vector<2x128xf32>
    %cst_15 = arith.constant dense<0.000000e+00> : vector<2x128xf32>
    %73 = tpu.matmul %71, %12, %cst_15 {dimension_numbers = #tpu.dot_dimension_numbers<[1], [0], [0], [1], [0, 0, 1, 1], [], []>} : vector<2x32xf32>, vector<32x128xf32>, vector<2x128xf32> -> vector<2x128xf32>
    %74 = arith.addf %72, %73 : vector<2x128xf32>
    %75 = math.tanh %74 : vector<2x128xf32>
    %76 = arith.negf %74 : vector<2x128xf32>
    %77 = math.exp %76 : vector<2x128xf32>
    %cst_16 = arith.constant 1.000000e+00 : f32
    %78 = vector.broadcast %cst_16 : f32 to vector<2x128xf32>
    %79 = arith.addf %78, %77 : vector<2x128xf32>
    %80 = arith.divf %78, %79 : vector<2x128xf32>
    %81 = arith.select %11, %75, %80 : vector<2x128xi1>, vector<2x128xf32>
    %82 = vector.extract_strided_slice %81 {offsets = [0, 0], sizes = [2, 32], strides = [1, 1]} : vector<2x128xf32> to vector<2x32xf32>
    %83 = vector.extract_strided_slice %81 {offsets = [0, 32], sizes = [2, 32], strides = [1, 1]} : vector<2x128xf32> to vector<2x32xf32>
    %84 = vector.extract_strided_slice %81 {offsets = [0, 64], sizes = [2, 32], strides = [1, 1]} : vector<2x128xf32> to vector<2x32xf32>
    %85 = vector.extract_strided_slice %81 {offsets = [0, 96], sizes = [2, 32], strides = [1, 1]} : vector<2x128xf32> to vector<2x32xf32>
    %86 = arith.mulf %83, %69 : vector<2x32xf32>
    %87 = arith.mulf %82, %84 : vector<2x32xf32>
    %88 = arith.addf %86, %87 : vector<2x32xf32>
    %89 = math.tanh %88 : vector<2x32xf32>
    %90 = arith.mulf %85, %89 : vector<2x32xf32>
    %91 = vector.extract_strided_slice %5 {offsets = [8, 0], sizes = [2, 128], strides = [1, 1]} : vector<16x128xf32> to vector<2x128xf32>
    %cst_17 = arith.constant dense<0.000000e+00> : vector<2x128xf32>
    %92 = tpu.matmul %90, %12, %cst_17 {dimension_numbers = #tpu.dot_dimension_numbers<[1], [0], [0], [1], [0, 0, 1, 1], [], []>} : vector<2x32xf32>, vector<32x128xf32>, vector<2x128xf32> -> vector<2x128xf32>
    %93 = arith.addf %91, %92 : vector<2x128xf32>
    %94 = math.tanh %93 : vector<2x128xf32>
    %95 = arith.negf %93 : vector<2x128xf32>
    %96 = math.exp %95 : vector<2x128xf32>
    %cst_18 = arith.constant 1.000000e+00 : f32
    %97 = vector.broadcast %cst_18 : f32 to vector<2x128xf32>
    %98 = arith.addf %97, %96 : vector<2x128xf32>
    %99 = arith.divf %97, %98 : vector<2x128xf32>
    %100 = arith.select %11, %94, %99 : vector<2x128xi1>, vector<2x128xf32>
    %101 = vector.extract_strided_slice %100 {offsets = [0, 0], sizes = [2, 32], strides = [1, 1]} : vector<2x128xf32> to vector<2x32xf32>
    %102 = vector.extract_strided_slice %100 {offsets = [0, 32], sizes = [2, 32], strides = [1, 1]} : vector<2x128xf32> to vector<2x32xf32>
    %103 = vector.extract_strided_slice %100 {offsets = [0, 64], sizes = [2, 32], strides = [1, 1]} : vector<2x128xf32> to vector<2x32xf32>
    %104 = vector.extract_strided_slice %100 {offsets = [0, 96], sizes = [2, 32], strides = [1, 1]} : vector<2x128xf32> to vector<2x32xf32>
    %105 = arith.mulf %102, %88 : vector<2x32xf32>
    %106 = arith.mulf %101, %103 : vector<2x32xf32>
    %107 = arith.addf %105, %106 : vector<2x32xf32>
    %108 = math.tanh %107 : vector<2x32xf32>
    %109 = arith.mulf %104, %108 : vector<2x32xf32>
    %110 = vector.extract_strided_slice %5 {offsets = [10, 0], sizes = [2, 128], strides = [1, 1]} : vector<16x128xf32> to vector<2x128xf32>
    %cst_19 = arith.constant dense<0.000000e+00> : vector<2x128xf32>
    %111 = tpu.matmul %109, %12, %cst_19 {dimension_numbers = #tpu.dot_dimension_numbers<[1], [0], [0], [1], [0, 0, 1, 1], [], []>} : vector<2x32xf32>, vector<32x128xf32>, vector<2x128xf32> -> vector<2x128xf32>
    %112 = arith.addf %110, %111 : vector<2x128xf32>
    %113 = math.tanh %112 : vector<2x128xf32>
    %114 = arith.negf %112 : vector<2x128xf32>
    %115 = math.exp %114 : vector<2x128xf32>
    %cst_20 = arith.constant 1.000000e+00 : f32
    %116 = vector.broadcast %cst_20 : f32 to vector<2x128xf32>
    %117 = arith.addf %116, %115 : vector<2x128xf32>
    %118 = arith.divf %116, %117 : vector<2x128xf32>
    %119 = arith.select %11, %113, %118 : vector<2x128xi1>, vector<2x128xf32>
    %120 = vector.extract_strided_slice %119 {offsets = [0, 0], sizes = [2, 32], strides = [1, 1]} : vector<2x128xf32> to vector<2x32xf32>
    %121 = vector.extract_strided_slice %119 {offsets = [0, 32], sizes = [2, 32], strides = [1, 1]} : vector<2x128xf32> to vector<2x32xf32>
    %122 = vector.extract_strided_slice %119 {offsets = [0, 64], sizes = [2, 32], strides = [1, 1]} : vector<2x128xf32> to vector<2x32xf32>
    %123 = vector.extract_strided_slice %119 {offsets = [0, 96], sizes = [2, 32], strides = [1, 1]} : vector<2x128xf32> to vector<2x32xf32>
    %124 = arith.mulf %121, %107 : vector<2x32xf32>
    %125 = arith.mulf %120, %122 : vector<2x32xf32>
    %126 = arith.addf %124, %125 : vector<2x32xf32>
    %127 = math.tanh %126 : vector<2x32xf32>
    %128 = arith.mulf %123, %127 : vector<2x32xf32>
    %129 = vector.extract_strided_slice %5 {offsets = [12, 0], sizes = [2, 128], strides = [1, 1]} : vector<16x128xf32> to vector<2x128xf32>
    %cst_21 = arith.constant dense<0.000000e+00> : vector<2x128xf32>
    %130 = tpu.matmul %128, %12, %cst_21 {dimension_numbers = #tpu.dot_dimension_numbers<[1], [0], [0], [1], [0, 0, 1, 1], [], []>} : vector<2x32xf32>, vector<32x128xf32>, vector<2x128xf32> -> vector<2x128xf32>
    %131 = arith.addf %129, %130 : vector<2x128xf32>
    %132 = math.tanh %131 : vector<2x128xf32>
    %133 = arith.negf %131 : vector<2x128xf32>
    %134 = math.exp %133 : vector<2x128xf32>
    %cst_22 = arith.constant 1.000000e+00 : f32
    %135 = vector.broadcast %cst_22 : f32 to vector<2x128xf32>
    %136 = arith.addf %135, %134 : vector<2x128xf32>
    %137 = arith.divf %135, %136 : vector<2x128xf32>
    %138 = arith.select %11, %132, %137 : vector<2x128xi1>, vector<2x128xf32>
    %139 = vector.extract_strided_slice %138 {offsets = [0, 0], sizes = [2, 32], strides = [1, 1]} : vector<2x128xf32> to vector<2x32xf32>
    %140 = vector.extract_strided_slice %138 {offsets = [0, 32], sizes = [2, 32], strides = [1, 1]} : vector<2x128xf32> to vector<2x32xf32>
    %141 = vector.extract_strided_slice %138 {offsets = [0, 64], sizes = [2, 32], strides = [1, 1]} : vector<2x128xf32> to vector<2x32xf32>
    %142 = vector.extract_strided_slice %138 {offsets = [0, 96], sizes = [2, 32], strides = [1, 1]} : vector<2x128xf32> to vector<2x32xf32>
    %143 = arith.mulf %140, %126 : vector<2x32xf32>
    %144 = arith.mulf %139, %141 : vector<2x32xf32>
    %145 = arith.addf %143, %144 : vector<2x32xf32>
    %146 = math.tanh %145 : vector<2x32xf32>
    %147 = arith.mulf %142, %146 : vector<2x32xf32>
    %148 = vector.extract_strided_slice %5 {offsets = [14, 0], sizes = [2, 128], strides = [1, 1]} : vector<16x128xf32> to vector<2x128xf32>
    %cst_23 = arith.constant dense<0.000000e+00> : vector<2x128xf32>
    %149 = tpu.matmul %147, %12, %cst_23 {dimension_numbers = #tpu.dot_dimension_numbers<[1], [0], [0], [1], [0, 0, 1, 1], [], []>} : vector<2x32xf32>, vector<32x128xf32>, vector<2x128xf32> -> vector<2x128xf32>
    %150 = arith.addf %148, %149 : vector<2x128xf32>
    %151 = math.tanh %150 : vector<2x128xf32>
    %152 = arith.negf %150 : vector<2x128xf32>
    %153 = math.exp %152 : vector<2x128xf32>
    %cst_24 = arith.constant 1.000000e+00 : f32
    %154 = vector.broadcast %cst_24 : f32 to vector<2x128xf32>
    %155 = arith.addf %154, %153 : vector<2x128xf32>
    %156 = arith.divf %154, %155 : vector<2x128xf32>
    %157 = arith.select %11, %151, %156 : vector<2x128xi1>, vector<2x128xf32>
    %158 = vector.extract_strided_slice %157 {offsets = [0, 0], sizes = [2, 32], strides = [1, 1]} : vector<2x128xf32> to vector<2x32xf32>
    %159 = vector.extract_strided_slice %157 {offsets = [0, 32], sizes = [2, 32], strides = [1, 1]} : vector<2x128xf32> to vector<2x32xf32>
    %160 = vector.extract_strided_slice %157 {offsets = [0, 64], sizes = [2, 32], strides = [1, 1]} : vector<2x128xf32> to vector<2x32xf32>
    %161 = vector.extract_strided_slice %157 {offsets = [0, 96], sizes = [2, 32], strides = [1, 1]} : vector<2x128xf32> to vector<2x32xf32>
    %162 = arith.mulf %159, %145 : vector<2x32xf32>
    %163 = arith.mulf %158, %160 : vector<2x32xf32>
    %164 = arith.addf %162, %163 : vector<2x32xf32>
    %165 = math.tanh %164 : vector<2x32xf32>
    %166 = arith.mulf %161, %165 : vector<2x32xf32>
    %c0_25 = arith.constant 0 : index
    %c0_26 = arith.constant 0 : index
    %167 = vector.load %arg4[%c0_25, %c0_26] : memref<1x32xf32, #tpu.memory_space<vmem>>, vector<1x32xf32>
    %168 = vector.broadcast %167 : vector<1x32xf32> to vector<2x32xf32>
    %169 = arith.mulf %166, %168 : vector<2x32xf32>
    %cst_27 = arith.constant dense<0.000000e+00> : vector<2xf32>
    %170 = vector.multi_reduction <add>, %169, %cst_27 [1] : vector<2x32xf32> to vector<2xf32>
    %171 = vector.shape_cast %170 : vector<2xf32> to vector<2x1xf32>
    %c0_28 = arith.constant 0 : index
    %172 = memref.load %arg5[%c0_28] : memref<1xf32, #tpu.memory_space<smem>>
    %173 = vector.broadcast %172 : f32 to vector<2x1xf32>
    %174 = arith.addf %171, %173 : vector<2x1xf32>
    %c0_29 = arith.constant 0 : index
    %c0_30 = arith.constant 0 : index
    %175 = vector.load %arg6[%c0_29, %c0_30] : memref<2x1xf32, #tpu.memory_space<vmem>>, vector<2x1xf32>
    tpu.vector_store %arg6[%c0_29, %c0_30], %174 {strides = array<i32>} : memref<2x1xf32, #tpu.memory_space<vmem>>, vector<2x1xf32>,
    return
  }
}

</mosaic_0001>

<llo_original>
// kernel: tpu_custom_call.1
$region0: #{tpu_custom_call.1}
  #allocation0 [shape = 'u32[]', space=smem, size = 0x4, offset = 0x4, fixed_abs, tag = 'smem constant byte address 0x4 - core index']
  #allocation1 [shape = 'u32[144,128]{1,0:T(1,128)}', space=vmem, size = 0x12000, scoped, tag = 'internal scratch']
  #allocation2 [shape = 'f32[1]{0:T(128)S(6)}', space=smem, size = 0x200, scoped, tag = 'scoped memory for tpu_custom_call.1']
  %s0 = inlined_call_operand.vmem [shape: f32[16,4], index: 0, kind: input, shape index: {}]
  %s1 = inlined_call_operand.vmem [shape: f32[4,128], index: 1, kind: input, shape index: {}]
  %s2 = inlined_call_operand.hbm [shape: f32[32,128], index: 2, kind: input, shape index: {}]
  %s3 = inlined_call_operand.vmem [shape: f32[1,128], index: 3, kind: input, shape index: {}]
  %s4 = inlined_call_operand.vmem [shape: f32[1,32], index: 4, kind: input, shape index: {}]
  %s5 = inlined_call_operand.<no memory space> [shape: f32[1], index: 5, kind: input, shape index: {}]
  %s6 = inlined_call_operand.vmem [shape: f32[2,1], index: 6, kind: output, shape index: {}]
  %s7 = sld [smem:[#allocation0]]
  $region38: #{tpu_custom_call.1} parent=0
    _
  %s9 = ssub.s32 1, %s7
  %s10 = scalar_select 0, %s9, %s7
  %11 = sst [smem:[#allocation2]] %s5
  $region1: #{tpu_custom_call.1} parent=0
    #allocation3 [shape = 'u8[16384]{0}', space=vmem, size = 0x4000, scoped, tag = 'input window, operand 2, single buffered']
    #allocation4 [shape = 's32[1]{0}', space=sflag, size = 0x4, scoped, tag = 'scoped memory for tpu_custom_call.1']
    %12 = vsyncpa [#allocation4], 0
    // Predicated region
    $region2: #{tpu_custom_call.1} parent=1 // pred_check
      _
    $region3: #{tpu_custom_call.1} parent=1 // pred_check_branch
      %14 = sbr.rel (0) target = $region5
    $region4: #{tpu_custom_call.1} parent=1 // pred_region
      _
    $region5: #{tpu_custom_call.1} parent=1 // pred_fallthru
      _
    // Predicated region
    $region6: #{tpu_custom_call.1} parent=1 // pred_check
      _
    $region7: #{tpu_custom_call.1} parent=1 // pred_check_branch
      %16 = sbr.rel (0) target = $region9
    $region8: #{tpu_custom_call.1} parent=1 // pred_region
      _
    $region9: #{tpu_custom_call.1} parent=1 // pred_fallthru
      _
    // Predicated region
    $region10: #{tpu_custom_call.1} parent=1 // pred_check
      _
    $region11: #{tpu_custom_call.1} parent=1 // pred_check_branch
      %18 = sbr.rel (0) target = $region13
    $region12: #{tpu_custom_call.1} parent=1 // pred_region
      %s20 = ssub.s32 512, 512
      %21 = vsyncadd [#allocation4], %s20
      %s22 = sshll.u32 [#allocation3], 4
      %s23 = int_to_ptr.vmem [resolvable:$true] %s22
      %28 = dma.hbm_to_vmem [thread:$0]  %s2, 512, %s23, [#allocation4], 128, 128, 8
    $region13: #{tpu_custom_call.1} parent=1 // pred_fallthru
      _
    // Predicated region
    $region14: #{tpu_custom_call.1} parent=1 // pred_check
      _
    $region15: #{tpu_custom_call.1} parent=1 // pred_check_branch
      %30 = sbr.rel (0) target = $region17
    $region16: #{tpu_custom_call.1} parent=1 // pred_region
      _
    $region17: #{tpu_custom_call.1} parent=1 // pred_fallthru
      _
    // Predicated region
    $region18: #{tpu_custom_call.1} parent=1 // pred_check
      _
    $region19: #{tpu_custom_call.1} parent=1 // pred_check_branch
      %32 = sbr.rel (0) target = $region21
    $region20: #{tpu_custom_call.1} parent=1 // pred_region
      _
    $region21: #{tpu_custom_call.1} parent=1 // pred_fallthru
      _
    // Predicated region
    $region22: #{tpu_custom_call.1} parent=1 // pred_check
      _
    $region23: #{tpu_custom_call.1} parent=1 // pred_check_branch
      %34 = sbr.rel (0) target = $region25
    $region24: #{tpu_custom_call.1} parent=1 // pred_region
      _
    $region25: #{tpu_custom_call.1} parent=1 // pred_fallthru
      _
    // Predicated region
    $region26: #{tpu_custom_call.1} parent=1 // pred_check
      _
    $region27: #{tpu_custom_call.1} parent=1 // pred_check_branch
      %36 = sbr.rel (0) target = $region29
    $region28: #{tpu_custom_call.1} parent=1 // pred_region
      %37 = dma.done [#allocation4], 512
    $region29: #{tpu_custom_call.1} parent=1 // pred_fallthru
      _
    %v38 = vld [vmem:[%s0] sm:$0xff]
    %v39 = vld [vmem:[%s0 + $0x8] sm:$0xff]
    %v40 = vld [vmem:[%s1] sm:$0xf]
    %v41 = vld [vmem:[%s3] sm:$0x1]
    %v43 = vlaneseq
    %v44 = vshrl.u32 %v43, 7
    %v45 = vsub.s32 0, %v44
    %v46 = vrot.slane %v41, %v45
    %vm48 = vcmask 31744
    %v50 = vsel %vm48, %v38, 0
    %v53 = vsel %vm48, %v39, 0
    %vm55 = vcmask 1043456
    %v57 = vsel %vm55, %v40, 0
    %59 = vmatprep.subr.mxu0 0.0
    %60 = vmatpush1.msra.mxu0 %v57
    %61 = vmatprep.subr.mxu0 0.0
    %62 = vmatpush1.msra.mxu0 0.0
    %63 = vmatprep.subr.mxu0 0.0
    %64 = vmatpush1.msra.mxu0 0.0
    %65 = vmatprep.subr.mxu0 0.0
    %66 = vmatpush1.msra.mxu0 0.0
    %67 = vmatprep.subr.mxu0 0.0
    %68 = vmatpush1.msra.mxu0 0.0
    %69 = vmatprep.subr.mxu0 0.0
    %70 = vmatpush1.msra.mxu0 0.0
    %71 = vmatprep.subr.mxu0 0.0
    %72 = vmatpush1.msra.mxu0 0.0
    %73 = vmatprep.subr.mxu0 0.0
    %74 = vmatpush1.msra.mxu0 0.0
    %75 = vmatprep.subr.mxu0 0.0
    %76 = vmatpush1.msra.mxu0 0.0
    %77 = vmatprep.subr.mxu0 0.0
    %78 = vmatpush1.msra.mxu0 0.0
    %79 = vmatprep.subr.mxu0 0.0
    %80 = vmatpush1.msra.mxu0 0.0
    %81 = vmatprep.subr.mxu0 0.0
    %82 = vmatpush1.msra.mxu0 0.0
    %83 = vmatprep.subr.mxu0 0.0
    %84 = vmatpush1.msra.mxu0 0.0
    %85 = vmatprep.subr.mxu0 0.0
    %86 = vmatpush1.msra.mxu0 0.0
    %87 = vmatprep.subr.mxu0 0.0
    %88 = vmatpush1.msra.mxu0 0.0
    %89 = vmatprep.subr.mxu0 0.0
    %90 = vmatpush1.msra.mxu0 0.0
    %91 = vmatprep.subr.mxu0 0.0
    %92 = vmatpush1.msra.mxu0 0.0
    %93 = vmatprep.subr.mxu0 0.0
    %94 = vmatpush1.msra.mxu0 0.0
    %95 = vmatprep.subr.mxu0 0.0
    %96 = vmatpush1.msra.mxu0 0.0
    %97 = vmatprep.subr.mxu0 0.0
    %98 = vmatpush1.msra.mxu0 0.0
    %99 = vmatprep.subr.mxu0 0.0
    %100 = vmatpush1.msra.mxu0 0.0
    %101 = vmatprep.subr.mxu0 0.0
    %102 = vmatpush1.msra.mxu0 0.0
    %103 = vmatprep.subr.mxu0 0.0
    %104 = vmatpush1.msra.mxu0 0.0
    %105 = vmatprep.subr.mxu0 0.0
    %106 = vmatpush1.msra.mxu0 0.0
    %107 = vmatprep.subr.mxu0 0.0
    %108 = vmatpush1.msra.mxu0 0.0
    %109 = vmatprep.subr.mxu0 0.0
    %110 = vmatpush1.msra.mxu0 0.0
    %111 = vmatprep.subr.mxu0 0.0
    %112 = vmatpush1.msra.mxu0 0.0
    %113 = vmatprep.subr.mxu0 0.0
    %114 = vmatpush1.msra.mxu0 0.0
    %115 = vmatprep.subr.mxu0 0.0
    %116 = vmatpush1.msra.mxu0 0.0
    %117 = vmatprep.subr.mxu0 0.0
    %118 = vmatpush1.msra.mxu0 0.0
    %119 = vmatprep.subr.mxu0 0.0
    %120 = vmatpush1.msra.mxu0 0.0
    %121 = vmatprep.subr.mxu0 0.0
    %122 = vmatpush1.msra.mxu0 0.0
    %123 = vmatprep.mubr.f32.mxu0 0.0
    %124 = vmatmul.mubr.f32.gmra.mrb[0].mxu0 %v50
    %v125 = vpop.f32.mrb[0].mxu0
    %v126 = vadd.f32 %v46, %v125
    %v127 = vpop.f32.mrb[0].mxu0
    %128 = vmatprep.mubr.f32.mxu0 0.0
    %129 = vmatmul.mubr.f32.gmra.mrb[0].mxu0 %v53
    %v130 = vpop.f32.mrb[0].mxu0
    %v131 = vadd.f32 %v46, %v130
    %v132 = vpop.f32.mrb[0].mxu0
    %133 = vdwg.mxu0
    %v134 = vlaneseq
    %v135 = vand.u32 %v134, 127
    %vm136 = vcmp.ge.s32.totalorder %v135, 64
    %vm137 = vcmp.lt.s32.totalorder %v135, 96
    %vm138 = vmand %vm136, %vm137
    %v139 = vld [vmem:[#allocation3] sm:$0xff]
    %v140 = vld [vmem:[#allocation3 + $0x8] sm:$0xff]
    %v141 = vld [vmem:[#allocation3 + $0x10] sm:$0xff]
    %v142 = vld [vmem:[#allocation3 + $0x18] sm:$0xff]
    %vm143 = vcmask 261120
    %v145 = vsel %vm143, 0.0, 0
    %147 = vmatprep.subr.mxu0 0.0
    %148 = vmatpush1.msra.mxu0 %v139
    %149 = vmatprep.subr.mxu0 0.0
    %150 = vmatpush1.msra.mxu0 %v140
    %151 = vmatprep.subr.mxu0 0.0
    %152 = vmatpush1.msra.mxu0 %v141
    %153 = vmatprep.subr.mxu0 0.0
    %154 = vmatpush1.msra.mxu0 %v142
    %155 = vmatprep.subr.mxu0 0.0
    %156 = vmatpush1.msra.mxu0 0.0
    %157 = vmatprep.subr.mxu0 0.0
    %158 = vmatpush1.msra.mxu0 0.0
    %159 = vmatprep.subr.mxu0 0.0
    %160 = vmatpush1.msra.mxu0 0.0
    %161 = vmatprep.subr.mxu0 0.0
    %162 = vmatpush1.msra.mxu0 0.0
    %163 = vmatprep.subr.mxu0 0.0
    %164 = vmatpush1.msra.mxu0 0.0
    %165 = vmatprep.subr.mxu0 0.0
    %166 = vmatpush1.msra.mxu0 0.0
    %167 = vmatprep.subr.mxu0 0.0
    %168 = vmatpush1.msra.mxu0 0.0
    %169 = vmatprep.subr.mxu0 0.0
    %170 = vmatpush1.msra.mxu0 0.0
    %171 = vmatprep.subr.mxu0 0.0
    %172 = vmatpush1.msra.mxu0 0.0
    %173 = vmatprep.subr.mxu0 0.0
    %174 = vmatpush1.msra.mxu0 0.0
    %175 = vmatprep.subr.mxu0 0.0
    %176 = vmatpush1.msra.mxu0 0.0
    %177 = vmatprep.subr.mxu0 0.0
    %178 = vmatpush1.msra.mxu0 0.0
    %179 = vmatprep.subr.mxu0 0.0
    %180 = vmatpush1.msra.mxu0 0.0
    %181 = vmatprep.subr.mxu0 0.0
    %182 = vmatpush1.msra.mxu0 0.0
    %183 = vmatprep.subr.mxu0 0.0
    %184 = vmatpush1.msra.mxu0 0.0
    %185 = vmatprep.subr.mxu0 0.0
    %186 = vmatpush1.msra.mxu0 0.0
    %187 = vmatprep.subr.mxu0 0.0
    %188 = vmatpush1.msra.mxu0 0.0
    %189 = vmatprep.subr.mxu0 0.0
    %190 = vmatpush1.msra.mxu0 0.0
    %191 = vmatprep.subr.mxu0 0.0
    %192 = vmatpush1.msra.mxu0 0.0
    %193 = vmatprep.subr.mxu0 0.0
    %194 = vmatpush1.msra.mxu0 0.0
    %195 = vmatprep.subr.mxu0 0.0
    %196 = vmatpush1.msra.mxu0 0.0
    %197 = vmatprep.subr.mxu0 0.0
    %198 = vmatpush1.msra.mxu0 0.0
    %199 = vmatprep.subr.mxu0 0.0
    %200 = vmatpush1.msra.mxu0 0.0
    %201 = vmatprep.subr.mxu0 0.0
    %202 = vmatpush1.msra.mxu0 0.0
    %203 = vmatprep.subr.mxu0 0.0
    %204 = vmatpush1.msra.mxu0 0.0
    %205 = vmatprep.subr.mxu0 0.0
    %206 = vmatpush1.msra.mxu0 0.0
    %207 = vmatprep.subr.mxu0 0.0
    %208 = vmatpush1.msra.mxu0 0.0
    %209 = vmatprep.subr.mxu0 0.0
    %210 = vmatpush1.msra.mxu0 0.0
    %211 = vmatprep.mubr.f32.mxu0 0.0
    %212 = vmatmul.mubr.f32.gmra.mrb[0].mxu0 %v145
    %v213 = vpop.f32.mrb[0].mxu0
    %v214 = vadd.f32 0.0, %v213
    %v215 = vpop.f32.mrb[0].mxu0
    %216 = vdwg.mxu0
    %v217 = vadd.f32 %v126, %v214
    %v218 = vtanh.pop %v217
    %v219 = vxor.u32 %v217, 2147483648
    %v220 = vmul.f32 %v219, 1.442695
    %v221 = vpow.pop %v220
    %v222 = vadd.f32 %v221, 1.0
    %v223 = vrcp.pop %v222
    %v224 = vmul.f32 1.0, %v223
    %v225 = vsel %vm138, %v218, %v224
    %v226 = vmul.f32 %v225, 0.0
    %228 = vrot.lane.b32.xlu0 %v225, 64
    %v229 = vpop.permute.xlu0 %228
    %v231 = vmul.f32 %v225, %v229
    %233 = vrot.lane.b32.xlu0 %v231, 32
    %v234 = vpop.permute.xlu0 %233
    %v236 = vadd.f32 %v226, %v234
    %v237 = vtanh.pop %v236
    %239 = vrot.lane.b32.xlu0 %v237, 64
    %v240 = vpop.permute.xlu0 %239
    %v242 = vmul.f32 %v225, %v240
    %244 = vrot.lane.b32.xlu0 %v242, 32
    %v245 = vpop.permute.xlu0 %244
    %v246 = vsel %vm143, %v245, 0
    %248 = vmatprep.subr.mxu0 0.0
    %249 = vmatpush1.msra.mxu0 %v139
    %250 = vmatprep.subr.mxu0 0.0
    %251 = vmatpush1.msra.mxu0 %v140
    %252 = vmatprep.subr.mxu0 0.0
    %253 = vmatpush1.msra.mxu0 %v141
    %254 = vmatprep.subr.mxu0 0.0
    %255 = vmatpush1.msra.mxu0 %v142
    %256 = vmatprep.subr.mxu0 0.0
    %257 = vmatpush1.msra.mxu0 0.0
    %258 = vmatprep.subr.mxu0 0.0
    %259 = vmatpush1.msra.mxu0 0.0
    %260 = vmatprep.subr.mxu0 0.0
    %261 = vmatpush1.msra.mxu0 0.0
    %262 = vmatprep.subr.mxu0 0.0
    %263 = vmatpush1.msra.mxu0 0.0
    %264 = vmatprep.subr.mxu0 0.0
    %265 = vmatpush1.msra.mxu0 0.0
    %266 = vmatprep.subr.mxu0 0.0
    %267 = vmatpush1.msra.mxu0 0.0
    %268 = vmatprep.subr.mxu0 0.0
    %269 = vmatpush1.msra.mxu0 0.0
    %270 = vmatprep.subr.mxu0 0.0
    %271 = vmatpush1.msra.mxu0 0.0
    %272 = vmatprep.subr.mxu0 0.0
    %273 = vmatpush1.msra.mxu0 0.0
    %274 = vmatprep.subr.mxu0 0.0
    %275 = vmatpush1.msra.mxu0 0.0
    %276 = vmatprep.subr.mxu0 0.0
    %277 = vmatpush1.msra.mxu0 0.0
    %278 = vmatprep.subr.mxu0 0.0
    %279 = vmatpush1.msra.mxu0 0.0
    %280 = vmatprep.subr.mxu0 0.0
    %281 = vmatpush1.msra.mxu0 0.0
    %282 = vmatprep.subr.mxu0 0.0
    %283 = vmatpush1.msra.mxu0 0.0
    %284 = vmatprep.subr.mxu0 0.0
    %285 = vmatpush1.msra.mxu0 0.0
    %286 = vmatprep.subr.mxu0 0.0
    %287 = vmatpush1.msra.mxu0 0.0
    %288 = vmatprep.subr.mxu0 0.0
    %289 = vmatpush1.msra.mxu0 0.0
    %290 = vmatprep.subr.mxu0 0.0
    %291 = vmatpush1.msra.mxu0 0.0
    %292 = vmatprep.subr.mxu0 0.0
    %293 = vmatpush1.msra.mxu0 0.0
    %294 = vmatprep.subr.mxu0 0.0
    %295 = vmatpush1.msra.mxu0 0.0
    %296 = vmatprep.subr.mxu0 0.0
    %297 = vmatpush1.msra.mxu0 0.0
    %298 = vmatprep.subr.mxu0 0.0
    %299 = vmatpush1.msra.mxu0 0.0
    %300 = vmatprep.subr.mxu0 0.0
    %301 = vmatpush1.msra.mxu0 0.0
    %302 = vmatprep.subr.mxu0 0.0
    %303 = vmatpush1.msra.mxu0 0.0
    %304 = vmatprep.subr.mxu0 0.0
    %305 = vmatpush1.msra.mxu0 0.0
    %306 = vmatprep.subr.mxu0 0.0
    %307 = vmatpush1.msra.mxu0 0.0
    %308 = vmatprep.subr.mxu0 0.0
    %309 = vmatpush1.msra.mxu0 0.0
    %310 = vmatprep.subr.mxu0 0.0
    %311 = vmatpush1.msra.mxu0 0.0
    %312 = vmatprep.mubr.f32.mxu0 0.0
    %313 = vmatmul.mubr.f32.gmra.mrb[0].mxu0 %v246
    %v314 = vpop.f32.mrb[0].mxu0
    %v315 = vadd.f32 0.0, %v314
    %v316 = vpop.f32.mrb[0].mxu0
    %317 = vdwg.mxu0
    %v319 = vrot.slane %v315, 6
    %v321 = vadd.f32 %v126, %v319
    %v322 = vtanh.pop %v321
    %v323 = vxor.u32 %v321, 2147483648
    %v324 = vmul.f32 %v323, 1.442695
    %v325 = vpow.pop %v324
    %v326 = vadd.f32 %v325, 1.0
    %v327 = vrcp.pop %v326
    %v328 = vmul.f32 1.0, %v327
    %v329 = vsel %vm138, %v322, %v328
    %v331 = vrot.slane %v236, 6
    %v333 = vmul.f32 %v329, %v331
    %335 = vrot.lane.b32.xlu0 %v329, 64
    %v336 = vpop.permute.xlu0 %335
    %v338 = vmul.f32 %v329, %v336
    %340 = vrot.lane.b32.xlu0 %v338, 32
    %v341 = vpop.permute.xlu0 %340
    %v343 = vadd.f32 %v333, %v341
    %v344 = vtanh.pop %v343
    %346 = vrot.lane.b32.xlu0 %v344, 64
    %v347 = vpop.permute.xlu0 %346
    %v349 = vmul.f32 %v329, %v347
    %v351 = vrot.slane %v349, 2
    %352 = vrot.lane.b32.xlu0 %v351, 32
    %v353 = vpop.permute.xlu0 %352
    %v354 = vsel %vm143, %v353, 0
    %356 = vmatprep.subr.mxu0 0.0
    %357 = vmatpush1.msra.mxu0 %v139
    %358 = vmatprep.subr.mxu0 0.0
    %359 = vmatpush1.msra.mxu0 %v140
    %360 = vmatprep.subr.mxu0 0.0
    %361 = vmatpush1.msra.mxu0 %v141
    %362 = vmatprep.subr.mxu0 0.0
    %363 = vmatpush1.msra.mxu0 %v142
    %364 = vmatprep.subr.mxu0 0.0
    %365 = vmatpush1.msra.mxu0 0.0
    %366 = vmatprep.subr.mxu0 0.0
    %367 = vmatpush1.msra.mxu0 0.0
    %368 = vmatprep.subr.mxu0 0.0
    %369 = vmatpush1.msra.mxu0 0.0
    %370 = vmatprep.subr.mxu0 0.0
    %371 = vmatpush1.msra.mxu0 0.0
    %372 = vmatprep.subr.mxu0 0.0
    %373 = vmatpush1.msra.mxu0 0.0
    %374 = vmatprep.subr.mxu0 0.0
    %375 = vmatpush1.msra.mxu0 0.0
    %376 = vmatprep.subr.mxu0 0.0
    %377 = vmatpush1.msra.mxu0 0.0
    %378 = vmatprep.subr.mxu0 0.0
    %379 = vmatpush1.msra.mxu0 0.0
    %380 = vmatprep.subr.mxu0 0.0
    %381 = vmatpush1.msra.mxu0 0.0
    %382 = vmatprep.subr.mxu0 0.0
    %383 = vmatpush1.msra.mxu0 0.0
    %384 = vmatprep.subr.mxu0 0.0
    %385 = vmatpush1.msra.mxu0 0.0
    %386 = vmatprep.subr.mxu0 0.0
    %387 = vmatpush1.msra.mxu0 0.0
    %388 = vmatprep.subr.mxu0 0.0
    %389 = vmatpush1.msra.mxu0 0.0
    %390 = vmatprep.subr.mxu0 0.0
    %391 = vmatpush1.msra.mxu0 0.0
    %392 = vmatprep.subr.mxu0 0.0
    %393 = vmatpush1.msra.mxu0 0.0
    %394 = vmatprep.subr.mxu0 0.0
    %395 = vmatpush1.msra.mxu0 0.0
    %396 = vmatprep.subr.mxu0 0.0
    %397 = vmatpush1.msra.mxu0 0.0
    %398 = vmatprep.subr.mxu0 0.0
    %399 = vmatpush1.msra.mxu0 0.0
    %400 = vmatprep.subr.mxu0 0.0
    %401 = vmatpush1.msra.mxu0 0.0
    %402 = vmatprep.subr.mxu0 0.0
    %403 = vmatpush1.msra.mxu0 0.0
    %404 = vmatprep.subr.mxu0 0.0
    %405 = vmatpush1.msra.mxu0 0.0
    %406 = vmatprep.subr.mxu0 0.0
    %407 = vmatpush1.msra.mxu0 0.0
    %408 = vmatprep.subr.mxu0 0.0
    %409 = vmatpush1.msra.mxu0 0.0
    %410 = vmatprep.subr.mxu0 0.0
    %411 = vmatpush1.msra.mxu0 0.0
    %412 = vmatprep.subr.mxu0 0.0
    %413 = vmatpush1.msra.mxu0 0.0
    %414 = vmatprep.subr.mxu0 0.0
    %415 = vmatpush1.msra.mxu0 0.0
    %416 = vmatprep.subr.mxu0 0.0
    %417 = vmatpush1.msra.mxu0 0.0
    %418 = vmatprep.subr.mxu0 0.0
    %419 = vmatpush1.msra.mxu0 0.0
    %420 = vmatprep.mubr.f32.mxu0 0.0
    %421 = vmatmul.mubr.f32.gmra.mrb[0].mxu0 %v354
    %v422 = vpop.f32.mrb[0].mxu0
    %v423 = vadd.f32 0.0, %v422
    %v424 = vpop.f32.mrb[0].mxu0
    %425 = vdwg.mxu0
    %v427 = vrot.slane %v423, 4
    %v429 = vadd.f32 %v126, %v427
    %v430 = vtanh.pop %v429
    %v431 = vxor.u32 %v429, 2147483648
    %v432 = vmul.f32 %v431, 1.442695
    %v433 = vpow.pop %v432
    %v434 = vadd.f32 %v433, 1.0
    %v435 = vrcp.pop %v434
    %v436 = vmul.f32 1.0, %v435
    %v437 = vsel %vm138, %v430, %v436
    %v439 = vrot.slane %v343, 6
    %v441 = vmul.f32 %v437, %v439
    %443 = vrot.lane.b32.xlu0 %v437, 64
    %v444 = vpop.permute.xlu0 %443
    %v446 = vmul.f32 %v437, %v444
    %448 = vrot.lane.b32.xlu0 %v446, 32
    %v449 = vpop.permute.xlu0 %448
    %v451 = vadd.f32 %v441, %v449
    %v452 = vtanh.pop %v451
    %454 = vrot.lane.b32.xlu0 %v452, 64
    %v455 = vpop.permute.xlu0 %454
    %v457 = vmul.f32 %v437, %v455
    %v459 = vrot.slane %v457, 4
    %460 = vrot.lane.b32.xlu0 %v459, 32
    %v461 = vpop.permute.xlu0 %460
    %v462 = vsel %vm143, %v461, 0
    %464 = vmatprep.subr.mxu0 0.0
    %465 = vmatpush1.msra.mxu0 %v139
    %466 = vmatprep.subr.mxu0 0.0
    %467 = vmatpush1.msra.mxu0 %v140
    %468 = vmatprep.subr.mxu0 0.0
    %469 = vmatpush1.msra.mxu0 %v141
    %470 = vmatprep.subr.mxu0 0.0
    %471 = vmatpush1.msra.mxu0 %v142
    %472 = vmatprep.subr.mxu0 0.0
    %473 = vmatpush1.msra.mxu0 0.0
    %474 = vmatprep.subr.mxu0 0.0
    %475 = vmatpush1.msra.mxu0 0.0
    %476 = vmatprep.subr.mxu0 0.0
    %477 = vmatpush1.msra.mxu0 0.0
    %478 = vmatprep.subr.mxu0 0.0
    %479 = vmatpush1.msra.mxu0 0.0
    %480 = vmatprep.subr.mxu0 0.0
    %481 = vmatpush1.msra.mxu0 0.0
    %482 = vmatprep.subr.mxu0 0.0
    %483 = vmatpush1.msra.mxu0 0.0
    %484 = vmatprep.subr.mxu0 0.0
    %485 = vmatpush1.msra.mxu0 0.0
    %486 = vmatprep.subr.mxu0 0.0
    %487 = vmatpush1.msra.mxu0 0.0
    %488 = vmatprep.subr.mxu0 0.0
    %489 = vmatpush1.msra.mxu0 0.0
    %490 = vmatprep.subr.mxu0 0.0
    %491 = vmatpush1.msra.mxu0 0.0
    %492 = vmatprep.subr.mxu0 0.0
    %493 = vmatpush1.msra.mxu0 0.0
    %494 = vmatprep.subr.mxu0 0.0
    %495 = vmatpush1.msra.mxu0 0.0
    %496 = vmatprep.subr.mxu0 0.0
    %497 = vmatpush1.msra.mxu0 0.0
    %498 = vmatprep.subr.mxu0 0.0
    %499 = vmatpush1.msra.mxu0 0.0
    %500 = vmatprep.subr.mxu0 0.0
    %501 = vmatpush1.msra.mxu0 0.0
    %502 = vmatprep.subr.mxu0 0.0
    %503 = vmatpush1.msra.mxu0 0.0
    %504 = vmatprep.subr.mxu0 0.0
    %505 = vmatpush1.msra.mxu0 0.0
    %506 = vmatprep.subr.mxu0 0.0
    %507 = vmatpush1.msra.mxu0 0.0
    %508 = vmatprep.subr.mxu0 0.0
    %509 = vmatpush1.msra.mxu0 0.0
    %510 = vmatprep.subr.mxu0 0.0
    %511 = vmatpush1.msra.mxu0 0.0
    %512 = vmatprep.subr.mxu0 0.0
    %513 = vmatpush1.msra.mxu0 0.0
    %514 = vmatprep.subr.mxu0 0.0
    %515 = vmatpush1.msra.mxu0 0.0
    %516 = vmatprep.subr.mxu0 0.0
    %517 = vmatpush1.msra.mxu0 0.0
    %518 = vmatprep.subr.mxu0 0.0
    %519 = vmatpush1.msra.mxu0 0.0
    %520 = vmatprep.subr.mxu0 0.0
    %521 = vmatpush1.msra.mxu0 0.0
    %522 = vmatprep.subr.mxu0 0.0
    %523 = vmatpush1.msra.mxu0 0.0
    %524 = vmatprep.subr.mxu0 0.0
    %525 = vmatpush1.msra.mxu0 0.0
    %526 = vmatprep.subr.mxu0 0.0
    %527 = vmatpush1.msra.mxu0 0.0
    %528 = vmatprep.mubr.f32.mxu0 0.0
    %529 = vmatmul.mubr.f32.gmra.mrb[0].mxu0 %v462
    %v530 = vpop.f32.mrb[0].mxu0
    %v531 = vadd.f32 0.0, %v530
    %v532 = vpop.f32.mrb[0].mxu0
    %533 = vdwg.mxu0
    %v535 = vrot.slane %v531, 2
    %v537 = vadd.f32 %v126, %v535
    %v538 = vtanh.pop %v537
    %v539 = vxor.u32 %v537, 2147483648
    %v540 = vmul.f32 %v539, 1.442695
    %v541 = vpow.pop %v540
    %v542 = vadd.f32 %v541, 1.0
    %v543 = vrcp.pop %v542
    %v544 = vmul.f32 1.0, %v543
    %v545 = vsel %vm138, %v538, %v544
    %v547 = vrot.slane %v451, 6
    %v549 = vmul.f32 %v545, %v547
    %551 = vrot.lane.b32.xlu0 %v545, 64
    %v552 = vpop.permute.xlu0 %551
    %v554 = vmul.f32 %v545, %v552
    %556 = vrot.lane.b32.xlu0 %v554, 32
    %v557 = vpop.permute.xlu0 %556
    %v559 = vadd.f32 %v549, %v557
    %v560 = vtanh.pop %v559
    %562 = vrot.lane.b32.xlu0 %v560, 64
    %v563 = vpop.permute.xlu0 %562
    %v565 = vmul.f32 %v545, %v563
    %v567 = vrot.slane %v565, 6
    %568 = vrot.lane.b32.xlu0 %v567, 32
    %v569 = vpop.permute.xlu0 %568
    %v570 = vsel %vm143, %v569, 0
    %572 = vmatprep.subr.mxu0 0.0
    %573 = vmatpush1.msra.mxu0 %v139
    %574 = vmatprep.subr.mxu0 0.0
    %575 = vmatpush1.msra.mxu0 %v140
    %576 = vmatprep.subr.mxu0 0.0
    %577 = vmatpush1.msra.mxu0 %v141
    %578 = vmatprep.subr.mxu0 0.0
    %579 = vmatpush1.msra.mxu0 %v142
    %580 = vmatprep.subr.mxu0 0.0
    %581 = vmatpush1.msra.mxu0 0.0
    %582 = vmatprep.subr.mxu0 0.0
    %583 = vmatpush1.msra.mxu0 0.0
    %584 = vmatprep.subr.mxu0 0.0
    %585 = vmatpush1.msra.mxu0 0.0
    %586 = vmatprep.subr.mxu0 0.0
    %587 = vmatpush1.msra.mxu0 0.0
    %588 = vmatprep.subr.mxu0 0.0
    %589 = vmatpush1.msra.mxu0 0.0
    %590 = vmatprep.subr.mxu0 0.0
    %591 = vmatpush1.msra.mxu0 0.0
    %592 = vmatprep.subr.mxu0 0.0
    %593 = vmatpush1.msra.mxu0 0.0
    %594 = vmatprep.subr.mxu0 0.0
    %595 = vmatpush1.msra.mxu0 0.0
    %596 = vmatprep.subr.mxu0 0.0
    %597 = vmatpush1.msra.mxu0 0.0
    %598 = vmatprep.subr.mxu0 0.0
    %599 = vmatpush1.msra.mxu0 0.0
    %600 = vmatprep.subr.mxu0 0.0
    %601 = vmatpush1.msra.mxu0 0.0
    %602 = vmatprep.subr.mxu0 0.0
    %603 = vmatpush1.msra.mxu0 0.0
    %604 = vmatprep.subr.mxu0 0.0
    %605 = vmatpush1.msra.mxu0 0.0
    %606 = vmatprep.subr.mxu0 0.0
    %607 = vmatpush1.msra.mxu0 0.0
    %608 = vmatprep.subr.mxu0 0.0
    %609 = vmatpush1.msra.mxu0 0.0
    %610 = vmatprep.subr.mxu0 0.0
    %611 = vmatpush1.msra.mxu0 0.0
    %612 = vmatprep.subr.mxu0 0.0
    %613 = vmatpush1.msra.mxu0 0.0
    %614 = vmatprep.subr.mxu0 0.0
    %615 = vmatpush1.msra.mxu0 0.0
    %616 = vmatprep.subr.mxu0 0.0
    %617 = vmatpush1.msra.mxu0 0.0
    %618 = vmatprep.subr.mxu0 0.0
    %619 = vmatpush1.msra.mxu0 0.0
    %620 = vmatprep.subr.mxu0 0.0
    %621 = vmatpush1.msra.mxu0 0.0
    %622 = vmatprep.subr.mxu0 0.0
    %623 = vmatpush1.msra.mxu0 0.0
    %624 = vmatprep.subr.mxu0 0.0
    %625 = vmatpush1.msra.mxu0 0.0
    %626 = vmatprep.subr.mxu0 0.0
    %627 = vmatpush1.msra.mxu0 0.0
    %628 = vmatprep.subr.mxu0 0.0
    %629 = vmatpush1.msra.mxu0 0.0
    %630 = vmatprep.subr.mxu0 0.0
    %631 = vmatpush1.msra.mxu0 0.0
    %632 = vmatprep.subr.mxu0 0.0
    %633 = vmatpush1.msra.mxu0 0.0
    %634 = vmatprep.subr.mxu0 0.0
    %635 = vmatpush1.msra.mxu0 0.0
    %636 = vmatprep.mubr.f32.mxu0 0.0
    %637 = vmatmul.mubr.f32.gmra.mrb[0].mxu0 %v570
    %v638 = vpop.f32.mrb[0].mxu0
    %v639 = vadd.f32 0.0, %v638
    %v640 = vpop.f32.mrb[0].mxu0
    %641 = vdwg.mxu0
    %v642 = vadd.f32 %v131, %v639
    %v643 = vtanh.pop %v642
    %v644 = vxor.u32 %v642, 2147483648
    %v645 = vmul.f32 %v644, 1.442695
    %v646 = vpow.pop %v645
    %v647 = vadd.f32 %v646, 1.0
    %v648 = vrcp.pop %v647
    %v649 = vmul.f32 1.0, %v648
    %v650 = vsel %vm138, %v643, %v649
    %v652 = vrot.slane %v559, 6
    %v654 = vmul.f32 %v650, %v652
    %656 = vrot.lane.b32.xlu0 %v650, 64
    %v657 = vpop.permute.xlu0 %656
    %v659 = vmul.f32 %v650, %v657
    %661 = vrot.lane.b32.xlu0 %v659, 32
    %v662 = vpop.permute.xlu0 %661
    %v664 = vadd.f32 %v654, %v662
    %v665 = vtanh.pop %v664
    %667 = vrot.lane.b32.xlu0 %v665, 64
    %v668 = vpop.permute.xlu0 %667
    %v670 = vmul.f32 %v650, %v668
    %672 = vrot.lane.b32.xlu0 %v670, 32
    %v673 = vpop.permute.xlu0 %672
    %v674 = vsel %vm143, %v673, 0
    %676 = vmatprep.subr.mxu0 0.0
    %677 = vmatpush1.msra.mxu0 %v139
    %678 = vmatprep.subr.mxu0 0.0
    %679 = vmatpush1.msra.mxu0 %v140
    %680 = vmatprep.subr.mxu0 0.0
    %681 = vmatpush1.msra.mxu0 %v141
    %682 = vmatprep.subr.mxu0 0.0
    %683 = vmatpush1.msra.mxu0 %v142
    %684 = vmatprep.subr.mxu0 0.0
    %685 = vmatpush1.msra.mxu0 0.0
    %686 = vmatprep.subr.mxu0 0.0
    %687 = vmatpush1.msra.mxu0 0.0
    %688 = vmatprep.subr.mxu0 0.0
    %689 = vmatpush1.msra.mxu0 0.0
    %690 = vmatprep.subr.mxu0 0.0
    %691 = vmatpush1.msra.mxu0 0.0
    %692 = vmatprep.subr.mxu0 0.0
    %693 = vmatpush1.msra.mxu0 0.0
    %694 = vmatprep.subr.mxu0 0.0
    %695 = vmatpush1.msra.mxu0 0.0
    %696 = vmatprep.subr.mxu0 0.0
    %697 = vmatpush1.msra.mxu0 0.0
    %698 = vmatprep.subr.mxu0 0.0
    %699 = vmatpush1.msra.mxu0 0.0
    %700 = vmatprep.subr.mxu0 0.0
    %701 = vmatpush1.msra.mxu0 0.0
    %702 = vmatprep.subr.mxu0 0.0
    %703 = vmatpush1.msra.mxu0 0.0
    %704 = vmatprep.subr.mxu0 0.0
    %705 = vmatpush1.msra.mxu0 0.0
    %706 = vmatprep.subr.mxu0 0.0
    %707 = vmatpush1.msra.mxu0 0.0
    %708 = vmatprep.subr.mxu0 0.0
    %709 = vmatpush1.msra.mxu0 0.0
    %710 = vmatprep.subr.mxu0 0.0
    %711 = vmatpush1.msra.mxu0 0.0
    %712 = vmatprep.subr.mxu0 0.0
    %713 = vmatpush1.msra.mxu0 0.0
    %714 = vmatprep.subr.mxu0 0.0
    %715 = vmatpush1.msra.mxu0 0.0
    %716 = vmatprep.subr.mxu0 0.0
    %717 = vmatpush1.msra.mxu0 0.0
    %718 = vmatprep.subr.mxu0 0.0
    %719 = vmatpush1.msra.mxu0 0.0
    %720 = vmatprep.subr.mxu0 0.0
    %721 = vmatpush1.msra.mxu0 0.0
    %722 = vmatprep.subr.mxu0 0.0
    %723 = vmatpush1.msra.mxu0 0.0
    %724 = vmatprep.subr.mxu0 0.0
    %725 = vmatpush1.msra.mxu0 0.0
    %726 = vmatprep.subr.mxu0 0.0
    %727 = vmatpush1.msra.mxu0 0.0
    %728 = vmatprep.subr.mxu0 0.0
    %729 = vmatpush1.msra.mxu0 0.0
    %730 = vmatprep.subr.mxu0 0.0
    %731 = vmatpush1.msra.mxu0 0.0
    %732 = vmatprep.subr.mxu0 0.0
    %733 = vmatpush1.msra.mxu0 0.0
    %734 = vmatprep.subr.mxu0 0.0
    %735 = vmatpush1.msra.mxu0 0.0
    %736 = vmatprep.subr.mxu0 0.0
    %737 = vmatpush1.msra.mxu0 0.0
    %738 = vmatprep.subr.mxu0 0.0
    %739 = vmatpush1.msra.mxu0 0.0
    %740 = vmatprep.mubr.f32.mxu0 0.0
    %741 = vmatmul.mubr.f32.gmra.mrb[0].mxu0 %v674
    %v742 = vpop.f32.mrb[0].mxu0
    %v743 = vadd.f32 0.0, %v742
    %v744 = vpop.f32.mrb[0].mxu0
    %745 = vdwg.mxu0
    %v747 = vrot.slane %v743, 6
    %v749 = vadd.f32 %v131, %v747
    %v750 = vtanh.pop %v749
    %v751 = vxor.u32 %v749, 2147483648
    %v752 = vmul.f32 %v751, 1.442695
    %v753 = vpow.pop %v752
    %v754 = vadd.f32 %v753, 1.0
    %v755 = vrcp.pop %v754
    %v756 = vmul.f32 1.0, %v755
    %v757 = vsel %vm138, %v750, %v756
    %v759 = vrot.slane %v664, 6
    %v761 = vmul.f32 %v757, %v759
    %763 = vrot.lane.b32.xlu0 %v757, 64
    %v764 = vpop.permute.xlu0 %763
    %v766 = vmul.f32 %v757, %v764
    %768 = vrot.lane.b32.xlu0 %v766, 32
    %v769 = vpop.permute.xlu0 %768
    %v771 = vadd.f32 %v761, %v769
    %v772 = vtanh.pop %v771
    %774 = vrot.lane.b32.xlu0 %v772, 64
    %v775 = vpop.permute.xlu0 %774
    %v777 = vmul.f32 %v757, %v775
    %v779 = vrot.slane %v777, 2
    %780 = vrot.lane.b32.xlu0 %v779, 32
    %v781 = vpop.permute.xlu0 %780
    %v782 = vsel %vm143, %v781, 0
    %784 = vmatprep.subr.mxu0 0.0
    %785 = vmatpush1.msra.mxu0 %v139
    %786 = vmatprep.subr.mxu0 0.0
    %787 = vmatpush1.msra.mxu0 %v140
    %788 = vmatprep.subr.mxu0 0.0
    %789 = vmatpush1.msra.mxu0 %v141
    %790 = vmatprep.subr.mxu0 0.0
    %791 = vmatpush1.msra.mxu0 %v142
    %792 = vmatprep.subr.mxu0 0.0
    %793 = vmatpush1.msra.mxu0 0.0
    %794 = vmatprep.subr.mxu0 0.0
    %795 = vmatpush1.msra.mxu0 0.0
    %796 = vmatprep.subr.mxu0 0.0
    %797 = vmatpush1.msra.mxu0 0.0
    %798 = vmatprep.subr.mxu0 0.0
    %799 = vmatpush1.msra.mxu0 0.0
    %800 = vmatprep.subr.mxu0 0.0
    %801 = vmatpush1.msra.mxu0 0.0
    %802 = vmatprep.subr.mxu0 0.0
    %803 = vmatpush1.msra.mxu0 0.0
    %804 = vmatprep.subr.mxu0 0.0
    %805 = vmatpush1.msra.mxu0 0.0
    %806 = vmatprep.subr.mxu0 0.0
    %807 = vmatpush1.msra.mxu0 0.0
    %808 = vmatprep.subr.mxu0 0.0
    %809 = vmatpush1.msra.mxu0 0.0
    %810 = vmatprep.subr.mxu0 0.0
    %811 = vmatpush1.msra.mxu0 0.0
    %812 = vmatprep.subr.mxu0 0.0
    %813 = vmatpush1.msra.mxu0 0.0
    %814 = vmatprep.subr.mxu0 0.0
    %815 = vmatpush1.msra.mxu0 0.0
    %816 = vmatprep.subr.mxu0 0.0
    %817 = vmatpush1.msra.mxu0 0.0
    %818 = vmatprep.subr.mxu0 0.0
    %819 = vmatpush1.msra.mxu0 0.0
    %820 = vmatprep.subr.mxu0 0.0
    %821 = vmatpush1.msra.mxu0 0.0
    %822 = vmatprep.subr.mxu0 0.0
    %823 = vmatpush1.msra.mxu0 0.0
    %824 = vmatprep.subr.mxu0 0.0
    %825 = vmatpush1.msra.mxu0 0.0
    %826 = vmatprep.subr.mxu0 0.0
    %827 = vmatpush1.msra.mxu0 0.0
    %828 = vmatprep.subr.mxu0 0.0
    %829 = vmatpush1.msra.mxu0 0.0
    %830 = vmatprep.subr.mxu0 0.0
    %831 = vmatpush1.msra.mxu0 0.0
    %832 = vmatprep.subr.mxu0 0.0
    %833 = vmatpush1.msra.mxu0 0.0
    %834 = vmatprep.subr.mxu0 0.0
    %835 = vmatpush1.msra.mxu0 0.0
    %836 = vmatprep.subr.mxu0 0.0
    %837 = vmatpush1.msra.mxu0 0.0
    %838 = vmatprep.subr.mxu0 0.0
    %839 = vmatpush1.msra.mxu0 0.0
    %840 = vmatprep.subr.mxu0 0.0
    %841 = vmatpush1.msra.mxu0 0.0
    %842 = vmatprep.subr.mxu0 0.0
    %843 = vmatpush1.msra.mxu0 0.0
    %844 = vmatprep.subr.mxu0 0.0
    %845 = vmatpush1.msra.mxu0 0.0
    %846 = vmatprep.subr.mxu0 0.0
    %847 = vmatpush1.msra.mxu0 0.0
    %848 = vmatprep.mubr.f32.mxu0 0.0
    %849 = vmatmul.mubr.f32.gmra.mrb[0].mxu0 %v782
    %v850 = vpop.f32.mrb[0].mxu0
    %v851 = vadd.f32 0.0, %v850
    %v852 = vpop.f32.mrb[0].mxu0
    %853 = vdwg.mxu0
    %v855 = vrot.slane %v851, 4
    %v857 = vadd.f32 %v131, %v855
    %v858 = vtanh.pop %v857
    %v859 = vxor.u32 %v857, 2147483648
    %v860 = vmul.f32 %v859, 1.442695
    %v861 = vpow.pop %v860
    %v862 = vadd.f32 %v861, 1.0
    %v863 = vrcp.pop %v862
    %v864 = vmul.f32 1.0, %v863
    %v865 = vsel %vm138, %v858, %v864
    %v867 = vrot.slane %v771, 6
    %v869 = vmul.f32 %v865, %v867
    %871 = vrot.lane.b32.xlu0 %v865, 64
    %v872 = vpop.permute.xlu0 %871
    %v874 = vmul.f32 %v865, %v872
    %876 = vrot.lane.b32.xlu0 %v874, 32
    %v877 = vpop.permute.xlu0 %876
    %v879 = vadd.f32 %v869, %v877
    %v880 = vtanh.pop %v879
    %882 = vrot.lane.b32.xlu0 %v880, 64
    %v883 = vpop.permute.xlu0 %882
    %v885 = vmul.f32 %v865, %v883
    %v887 = vrot.slane %v885, 4
    %888 = vrot.lane.b32.xlu0 %v887, 32
    %v889 = vpop.permute.xlu0 %888
    %v890 = vsel %vm143, %v889, 0
    %892 = vmatprep.subr.mxu0 0.0
    %893 = vmatpush1.msra.mxu0 %v139
    %894 = vmatprep.subr.mxu0 0.0
    %895 = vmatpush1.msra.mxu0 %v140
    %896 = vmatprep.subr.mxu0 0.0
    %897 = vmatpush1.msra.mxu0 %v141
    %898 = vmatprep.subr.mxu0 0.0
    %899 = vmatpush1.msra.mxu0 %v142
    %900 = vmatprep.subr.mxu0 0.0
    %901 = vmatpush1.msra.mxu0 0.0
    %902 = vmatprep.subr.mxu0 0.0
    %903 = vmatpush1.msra.mxu0 0.0
    %904 = vmatprep.subr.mxu0 0.0
    %905 = vmatpush1.msra.mxu0 0.0
    %906 = vmatprep.subr.mxu0 0.0
    %907 = vmatpush1.msra.mxu0 0.0
    %908 = vmatprep.subr.mxu0 0.0
    %909 = vmatpush1.msra.mxu0 0.0
    %910 = vmatprep.subr.mxu0 0.0
    %911 = vmatpush1.msra.mxu0 0.0
    %912 = vmatprep.subr.mxu0 0.0
    %913 = vmatpush1.msra.mxu0 0.0
    %914 = vmatprep.subr.mxu0 0.0
    %915 = vmatpush1.msra.mxu0 0.0
    %916 = vmatprep.subr.mxu0 0.0
    %917 = vmatpush1.msra.mxu0 0.0
    %918 = vmatprep.subr.mxu0 0.0
    %919 = vmatpush1.msra.mxu0 0.0
    %920 = vmatprep.subr.mxu0 0.0
    %921 = vmatpush1.msra.mxu0 0.0
    %922 = vmatprep.subr.mxu0 0.0
    %923 = vmatpush1.msra.mxu0 0.0
    %924 = vmatprep.subr.mxu0 0.0
    %925 = vmatpush1.msra.mxu0 0.0
    %926 = vmatprep.subr.mxu0 0.0
    %927 = vmatpush1.msra.mxu0 0.0
    %928 = vmatprep.subr.mxu0 0.0
    %929 = vmatpush1.msra.mxu0 0.0
    %930 = vmatprep.subr.mxu0 0.0
    %931 = vmatpush1.msra.mxu0 0.0
    %932 = vmatprep.subr.mxu0 0.0
    %933 = vmatpush1.msra.mxu0 0.0
    %934 = vmatprep.subr.mxu0 0.0
    %935 = vmatpush1.msra.mxu0 0.0
    %936 = vmatprep.subr.mxu0 0.0
    %937 = vmatpush1.msra.mxu0 0.0
    %938 = vmatprep.subr.mxu0 0.0
    %939 = vmatpush1.msra.mxu0 0.0
    %940 = vmatprep.subr.mxu0 0.0
    %941 = vmatpush1.msra.mxu0 0.0
    %942 = vmatprep.subr.mxu0 0.0
    %943 = vmatpush1.msra.mxu0 0.0
    %944 = vmatprep.subr.mxu0 0.0
    %945 = vmatpush1.msra.mxu0 0.0
    %946 = vmatprep.subr.mxu0 0.0
    %947 = vmatpush1.msra.mxu0 0.0
    %948 = vmatprep.subr.mxu0 0.0
    %949 = vmatpush1.msra.mxu0 0.0
    %950 = vmatprep.subr.mxu0 0.0
    %951 = vmatpush1.msra.mxu0 0.0
    %952 = vmatprep.subr.mxu0 0.0
    %953 = vmatpush1.msra.mxu0 0.0
    %954 = vmatprep.subr.mxu0 0.0
    %955 = vmatpush1.msra.mxu0 0.0
    %956 = vmatprep.mubr.f32.mxu0 0.0
    %957 = vmatmul.mubr.f32.gmra.mrb[0].mxu0 %v890
    %v958 = vpop.f32.mrb[0].mxu0
    %v959 = vadd.f32 0.0, %v958
    %v960 = vpop.f32.mrb[0].mxu0
    %961 = vdwg.mxu0
    %v963 = vrot.slane %v959, 2
    %v965 = vadd.f32 %v131, %v963
    %v966 = vtanh.pop %v965
    %v967 = vxor.u32 %v965, 2147483648
    %v968 = vmul.f32 %v967, 1.442695
    %v969 = vpow.pop %v968
    %v970 = vadd.f32 %v969, 1.0
    %v971 = vrcp.pop %v970
    %v972 = vmul.f32 1.0, %v971
    %v973 = vsel %vm138, %v966, %v972
    %v975 = vrot.slane %v879, 6
    %v977 = vmul.f32 %v973, %v975
    %979 = vrot.lane.b32.xlu0 %v973, 64
    %v980 = vpop.permute.xlu0 %979
    %v982 = vmul.f32 %v973, %v980
    %984 = vrot.lane.b32.xlu0 %v982, 32
    %v985 = vpop.permute.xlu0 %984
    %v987 = vadd.f32 %v977, %v985
    %v988 = vtanh.pop %v987
    %990 = vrot.lane.b32.xlu0 %v988, 64
    %v991 = vpop.permute.xlu0 %990
    %v993 = vmul.f32 %v973, %v991
    %v994 = vld [vmem:[%s4] sm:$0x1]
    %v996 = vlaneseq
    %v997 = vshrl.u32 %v996, 7
    %v998 = vsub.s32 0, %v997
    %v999 = vrot.slane %v994, %v998
    %1000 = vrot.lane.b32.xlu0 %v999, 96
    %v1001 = vpop.permute.xlu0 %1000
    %v1003 = vmul.f32 %v993, %v1001
    %1005 = vrot.lane.b32.xlu0 %v1003, 32
    %v1006 = vpop.permute.xlu0 %1005
    %vm1008 = vcmask 261126
    %v1009 = vsel %vm1008, %v1006, 0.0
    %1010 = vadd.xlane.f32.xlu0 %v1009
    %v1011 = vpop.xlane.xlu0 %1010
    %s1012 = sld [smem:[#allocation2]]
    %v1013 = vstv %s1012
    %v1014 = vadd.f32 %v1011, %v1013
    %vm1015 = vcmask 7174
    %1016 = vst.msk [vmem:[%s6 - $0x6] sm:$0xc0] %vm1015, %v1014
    // Predicated region
    $region30: #{tpu_custom_call.1} parent=1 // pred_check
      _
    $region31: #{tpu_custom_call.1} parent=1 // pred_check_branch
      %1018 = sbr.rel (0) target = $region33
    $region32: #{tpu_custom_call.1} parent=1 // pred_region
      _
    $region33: #{tpu_custom_call.1} parent=1 // pred_fallthru
      _
    // Predicated region
    $region34: #{tpu_custom_call.1} parent=1 // pred_check
      _
    $region35: #{tpu_custom_call.1} parent=1 // pred_check_branch
      %1020 = sbr.rel (0) target = $region37
    $region36: #{tpu_custom_call.1} parent=1 // pred_region
      _
    $region37: #{tpu_custom_call.1} parent=1 // pred_fallthru
      _
    %1021 = vsyncpa [#allocation4], 1

</llo_original>
